<compile_context>
chip_gen: v6e
topology: v6e:2x2x1
jax: 0.10.0
libtpu: 0.0.40
codegen_flags: <defaults>
</compile_context>

<pallas_src>
import jax
import jax.numpy as jnp
from jax.experimental import pallas as pl
from jax.experimental.pallas import tpu as pltpu

IN_FEATURES = 3
OUT_FEATURES = 4


def _linear_kernel(x_ref, wb_ref, o_ref):
    # x_ref: (B, IN), wb_ref: (IN+1, OUT) = [W.T ; b], o_ref: (B, OUT)
    x = x_ref[...]
    wb = wb_ref[...]
    # Bias row seeds the accumulator (saves the trailing vadd), then three
    # unrolled broadcast-FMAs on the VPU: (B,1) * (1,OUT) -> (B,OUT).
    # Everything stays in the VALU slot; no MXU involvement.
    y = wb[IN_FEATURES:IN_FEATURES + 1, :]           # (1, OUT) bias, broadcasts over B
    y = y + x[:, 0:1] * wb[0:1, :]
    y = y + x[:, 1:2] * wb[1:2, :]
    y = y + x[:, 2:3] * wb[2:3, :]
    o_ref[...] = y.astype(o_ref.dtype)


def linear_pallas(x, wb):
    """y = x @ wb[:IN] + wb[IN]  (equivalent to torch nn.Linear(3, 4) forward)."""
    B, in_f = x.shape
    out_f = wb.shape[1]
    itemsize = jnp.dtype(x.dtype).itemsize
    cost = pl.CostEstimate(
        flops=2 * B * in_f * out_f,
        bytes_accessed=itemsize * (x.size + wb.size + B * out_f),
        transcendentals=0,
    )
    # Gridless pallas_call: both operands are tiny and fit trivially in VMEM,
    # so we skip BlockSpec tiling / double-buffering entirely.
    return pl.pallas_call(
        _linear_kernel,
        out_shape=jax.ShapeDtypeStruct((B, out_f), x.dtype),
        in_specs=[
            pl.BlockSpec(memory_space=pltpu.MemorySpace.VMEM),
            pl.BlockSpec(memory_space=pltpu.MemorySpace.VMEM),
        ],
        out_specs=pl.BlockSpec(memory_space=pltpu.MemorySpace.VMEM),
        cost_estimate=cost,
    )(x, wb)


class TestNetPallas:
    """JAX/Pallas equivalent of the PyTorch TestNet (a single nn.Linear(3, 4))."""

    def __init__(self, key):
        in_features, out_features = IN_FEATURES, OUT_FEATURES
        kw, kb = jax.random.split(key)
        # Deterministic init mimicking nn.Linear's default uniform(-1/sqrt(in), 1/sqrt(in))
        bound = 1.0 / jnp.sqrt(jnp.float32(in_features))
        # Torch-layout weight (OUT, IN) kept for reference/interop...
        self.weight = jax.random.uniform(
            kw, (out_features, in_features), jnp.float32, -bound, bound
        )
        self.bias = jax.random.uniform(
            kb, (out_features,), jnp.float32, -bound, bound
        )
        # ...but the kernel-facing parameter is precomputed ONCE here: weight.T
        # and bias packed into a single (IN+1, OUT) slab, so the hot path has
        # exactly one parameter operand and no per-call transpose/reshape glue.
        self.wb = jnp.concatenate(
            [self.weight.T, self.bias.reshape(1, -1)], axis=0
        )  # (IN+1, OUT)

    def __call__(self, x):
        return linear_pallas(x, self.wb)


if __name__ == "__main__":
    key = jax.random.PRNGKey(0)
    k_param, k_x = jax.random.split(key)

    model = TestNetPallas(k_param)

    batch = 8
    x = jax.random.normal(k_x, (batch, IN_FEATURES), jnp.float32)

    y = model(x)
    y = jax.block_until_ready(y)

    # sanity check against plain-JAX reference (torch nn.Linear semantics)
    y_ref = x @ model.weight.T + model.bias
    assert y.shape == (batch, OUT_FEATURES)
    assert jnp.allclose(y, y_ref, atol=1e-5, rtol=1e-5)

    print("KERNEL_OK")
</pallas_src>

<mosaic_0001>
module attributes {stable_mosaic.version = 11 : i64} {
  func.func @_linear_kernel(%arg0: memref<8x3xf32, #tpu.memory_space<vmem>>, %arg1: memref<4x4xf32, #tpu.memory_space<vmem>>, %arg2: memref<8x4xf32, #tpu.memory_space<vmem>>) attributes {dimension_semantics = [], scalar_prefetch = 0 : i64, scratch_operands = 0 : i64, tpu.core_type = #tpu.core_type<tc>} {
    %c0 = arith.constant 0 : index
    %c0_0 = arith.constant 0 : index
    %0 = vector.load %arg0[%c0, %c0_0] : memref<8x3xf32, #tpu.memory_space<vmem>>, vector<8x3xf32>
    %c0_1 = arith.constant 0 : index
    %c0_2 = arith.constant 0 : index
    %1 = vector.load %arg1[%c0_1, %c0_2] : memref<4x4xf32, #tpu.memory_space<vmem>>, vector<4x4xf32>
    %2 = vector.extract_strided_slice %1 {offsets = [3, 0], sizes = [1, 4], strides = [1, 1]} : vector<4x4xf32> to vector<1x4xf32>
    %3 = vector.extract_strided_slice %0 {offsets = [0, 0], sizes = [8, 1], strides = [1, 1]} : vector<8x3xf32> to vector<8x1xf32>
    %4 = vector.extract_strided_slice %1 {offsets = [0, 0], sizes = [1, 4], strides = [1, 1]} : vector<4x4xf32> to vector<1x4xf32>
    %5 = vector.broadcast %3 : vector<8x1xf32> to vector<8x4xf32>
    %6 = vector.broadcast %4 : vector<1x4xf32> to vector<8x4xf32>
    %7 = arith.mulf %5, %6 : vector<8x4xf32>
    %8 = vector.broadcast %2 : vector<1x4xf32> to vector<8x4xf32>
    %9 = arith.addf %8, %7 : vector<8x4xf32>
    %10 = vector.extract_strided_slice %0 {offsets = [0, 1], sizes = [8, 1], strides = [1, 1]} : vector<8x3xf32> to vector<8x1xf32>
    %11 = vector.extract_strided_slice %1 {offsets = [1, 0], sizes = [1, 4], strides = [1, 1]} : vector<4x4xf32> to vector<1x4xf32>
    %12 = vector.broadcast %10 : vector<8x1xf32> to vector<8x4xf32>
    %13 = vector.broadcast %11 : vector<1x4xf32> to vector<8x4xf32>
    %14 = arith.mulf %12, %13 : vector<8x4xf32>
    %15 = arith.addf %9, %14 : vector<8x4xf32>
    %16 = vector.extract_strided_slice %0 {offsets = [0, 2], sizes = [8, 1], strides = [1, 1]} : vector<8x3xf32> to vector<8x1xf32>
    %17 = vector.extract_strided_slice %1 {offsets = [2, 0], sizes = [1, 4], strides = [1, 1]} : vector<4x4xf32> to vector<1x4xf32>
    %18 = vector.broadcast %16 : vector<8x1xf32> to vector<8x4xf32>
    %19 = vector.broadcast %17 : vector<1x4xf32> to vector<8x4xf32>
    %20 = arith.mulf %18, %19 : vector<8x4xf32>
    %21 = arith.addf %15, %20 : vector<8x4xf32>
    %c0_3 = arith.constant 0 : index
    %c0_4 = arith.constant 0 : index
    %22 = vector.load %arg2[%c0_3, %c0_4] : memref<8x4xf32, #tpu.memory_space<vmem>>, vector<8x4xf32>
    tpu.vector_store %arg2[%c0_3, %c0_4], %21 {strides = array<i32>} : memref<8x4xf32, #tpu.memory_space<vmem>>, vector<8x4xf32>,
    return
  }
}

</mosaic_0001>

<llo_original>
// kernel: tpu_custom_call.1
$region0: #{tpu_custom_call.1}
  #allocation0 [shape = 'u32[]', space=smem, size = 0x4, offset = 0x4, fixed_abs, tag = 'smem constant byte address 0x4 - core index']
  #allocation1 [shape = 'u32[144,128]{1,0:T(1,128)}', space=vmem, size = 0x12000, scoped, tag = 'internal scratch']
  %s0 = inlined_call_operand.vmem [shape: f32[8,3], index: 0, kind: input, shape index: {}]
  %s1 = inlined_call_operand.vmem [shape: f32[4,4], index: 1, kind: input, shape index: {}]
  %s2 = inlined_call_operand.vmem [shape: f32[8,4], index: 2, kind: output, shape index: {}]
  %s3 = sld [smem:[#allocation0]]
  $region18: #{tpu_custom_call.1} parent=0
    _
  %s5 = ssub.s32 1, %s3
  %s6 = scalar_select 0, %s5, %s3
  // Predicated region
  $region2: #{tpu_custom_call.1} parent=0 // pred_check
    _
  $region3: #{tpu_custom_call.1} parent=0 // pred_check_branch
    %8 = sbr.rel (0) target = $region5
  $region4: #{tpu_custom_call.1} parent=0 // pred_region
    _
  $region5: #{tpu_custom_call.1} parent=0 // pred_fallthru
    _
  // Predicated region
  $region6: #{tpu_custom_call.1} parent=0 // pred_check
    _
  $region7: #{tpu_custom_call.1} parent=0 // pred_check_branch
    %10 = sbr.rel (0) target = $region9
  $region8: #{tpu_custom_call.1} parent=0 // pred_region
    _
  $region9: #{tpu_custom_call.1} parent=0 // pred_fallthru
    _
  %v11 = vld [vmem:[%s0] sm:$0xff]
  %v12 = vld [vmem:[%s1] sm:$0xf]
  %14 = vset.pattern.permute.xlu0 0
  %15 = vperm.xlu0 %14, %v11
  %v16 = vpop.permute.xlu0 %15
  %v18 = vlaneseq
  %v19 = vshrl.u32 %v18, 7
  %v20 = vsub.s32 0, %v19
  %v21 = vrot.slane %v12, %v20
  %v22 = vmul.f32 %v16, %v21
  %v23 = vlaneseq
  %v24 = vshrl.u32 %v23, 7
  %v25 = vsub.s32 3, %v24
  %v26 = vrot.slane %v12, %v25
  %v27 = vadd.f32 %v26, %v22
  %28 = vset.pattern.permute.xlu0 1
  %29 = vperm.xlu0 %28, %v11
  %v30 = vpop.permute.xlu0 %29
  %v32 = vlaneseq
  %v33 = vshrl.u32 %v32, 7
  %v34 = vsub.s32 1, %v33
  %v35 = vrot.slane %v12, %v34
  %v36 = vmul.f32 %v30, %v35
  %v37 = vadd.f32 %v27, %v36
  %38 = vset.pattern.permute.xlu0 2
  %39 = vperm.xlu0 %38, %v11
  %v40 = vpop.permute.xlu0 %39
  %v42 = vlaneseq
  %v43 = vshrl.u32 %v42, 7
  %v44 = vsub.s32 2, %v43
  %v45 = vrot.slane %v12, %v44
  %v46 = vmul.f32 %v40, %v45
  %v47 = vadd.f32 %v37, %v46
  %vm48 = vcmask 31744
  %49 = vst.msk [vmem:[%s2] sm:$0xff] %vm48, %v47
  // Predicated region
  $region10: #{tpu_custom_call.1} parent=0 // pred_check
    _
  $region11: #{tpu_custom_call.1} parent=0 // pred_check_branch
    %51 = sbr.rel (0) target = $region13
  $region12: #{tpu_custom_call.1} parent=0 // pred_region
    _
  $region13: #{tpu_custom_call.1} parent=0 // pred_fallthru
    _
  // Predicated region
  $region14: #{tpu_custom_call.1} parent=0 // pred_check
    _
  $region15: #{tpu_custom_call.1} parent=0 // pred_check_branch
    %53 = sbr.rel (0) target = $region17
  $region16: #{tpu_custom_call.1} parent=0 // pred_region
    _
  $region17: #{tpu_custom_call.1} parent=0 // pred_fallthru
    _

</llo_original>
